<compile_context>
chip_gen: v5e
topology: v5e:2x2
jax: 0.10.0
libtpu: 0.0.40
codegen_flags: <defaults>
</compile_context>

<pallas_src>
import jax
import jax.numpy as jnp
from jax.experimental import pallas as pl
from jax.experimental.pallas import tpu as pltpu


def _round_up(n: int, m: int) -> int:
    return ((n + m - 1) // m) * m


def mlp_kernel(x_ref, w1_ref, b1_ref, w2_ref, b2_ref, o_ref):
    # In-kernel cast of the streamed f32 x tile to the MXU input dtype.
    x = x_ref[...].astype(w1_ref.dtype)
    # Hidden layer: MXU matmul with f32 accumulation, bias + ReLU in f32.
    h = jnp.dot(x, w1_ref[...], preferred_element_type=jnp.float32)
    h = jnp.maximum(h + b1_ref[...], 0.0)
    # Single bf16 cast of the activation, second MXU matmul, f32 bias add.
    out = jnp.dot(h.astype(w2_ref.dtype), w2_ref[...],
                  preferred_element_type=jnp.float32)
    o_ref[...] = (out + b2_ref[...]).astype(o_ref.dtype)


def prepare_params(w1, b1, w2, b2):
    """One-time param prep (outside the per-step jitted path):
    weights -> bf16 MXU input dtype, biases stay f32."""
    return (w1.astype(jnp.bfloat16), b1.astype(jnp.float32),
            w2.astype(jnp.bfloat16), b2.astype(jnp.float32))


def _pick_tm(batch, in_size, hidden, out_size):
    # Tiny batches: one full-batch tile (a full-dim block is legal at any size).
    if batch <= 128:
        return batch
    # Larger batches: up to 512 rows per tile, multiple of 16 (bf16 sublane
    # packing), and at least 2 grid steps so v7x's two TCs both get work.
    tm = min(512, _round_up(pl.cdiv(batch, 2), 16))

    # Conservative VMEM budget (v5e scoped default is 16 MiB): double-buffered
    # x / out tiles + (double-buffered) resident weights + biases.
    def vmem_bytes(t):
        return (2 * t * in_size * 4                # x tile, f32
                + 2 * t * out_size * 4             # out tile, f32
                + 2 * (in_size * hidden + hidden * out_size) * 2   # bf16 weights
                + 2 * (hidden + out_size) * 4)     # biases, f32

    while tm > 64 and vmem_bytes(tm) > 12 * 1024 * 1024:
        tm = max(64, _round_up(tm // 2, 16))
    return tm


def mlp_forward(x, w1, b1, w2, b2, *, tm=None):
    """x:(B,in) f32, w1:(in,H), b1:(1,H), w2:(H,out), b2:(1,out) -> (B,out) f32."""
    batch, in_size = x.shape
    hidden = w1.shape[1]
    out_size = w2.shape[1]

    if tm is None:
        tm = _pick_tm(batch, in_size, hidden, out_size)
    grid = (pl.cdiv(batch, tm),)

    flops = 2 * batch * (in_size * hidden + hidden * out_size)
    bytes_accessed = (x.size * x.dtype.itemsize
                      + w1.size * w1.dtype.itemsize
                      + w2.size * w2.dtype.itemsize
                      + b1.size * b1.dtype.itemsize
                      + b2.size * b2.dtype.itemsize
                      + batch * out_size * 4)

    return pl.pallas_call(
        mlp_kernel,
        out_shape=jax.ShapeDtypeStruct((batch, out_size), jnp.float32),
        grid=grid,
        in_specs=[
            # x: one batch tile per grid step (auto double-buffered DMA),
            # full (unpadded) feature dim as the block's last axis.
            pl.BlockSpec((tm, in_size), lambda i: (i, 0)),
            # Weights / biases: constant block index -> fetched once, resident.
            pl.BlockSpec((in_size, hidden), lambda i: (0, 0)),
            pl.BlockSpec((1, hidden), lambda i: (0, 0)),
            pl.BlockSpec((hidden, out_size), lambda i: (0, 0)),
            pl.BlockSpec((1, out_size), lambda i: (0, 0)),
        ],
        # Unpadded output block; partial last tile (if any) is masked on store.
        out_specs=pl.BlockSpec((tm, out_size), lambda i: (i, 0)),
        compiler_params=pltpu.CompilerParams(
            dimension_semantics=("parallel",),
        ),
        cost_estimate=pl.CostEstimate(
            flops=flops, transcendentals=0, bytes_accessed=bytes_accessed),
    )(x, w1, b1, w2, b2)


def init_params(key, input_size, hidden_size, output_size, dtype=jnp.float32):
    # Mimic PyTorch nn.Linear default init: U(-1/sqrt(fan_in), 1/sqrt(fan_in)).
    k1, k2, k3, k4 = jax.random.split(key, 4)
    bound1 = 1.0 / (input_size ** 0.5)
    bound2 = 1.0 / (hidden_size ** 0.5)
    w1 = jax.random.uniform(k1, (input_size, hidden_size), dtype,
                            minval=-bound1, maxval=bound1)
    b1 = jax.random.uniform(k2, (1, hidden_size), dtype,
                            minval=-bound1, maxval=bound1)
    w2 = jax.random.uniform(k3, (hidden_size, output_size), dtype,
                            minval=-bound2, maxval=bound2)
    b2 = jax.random.uniform(k4, (1, output_size), dtype,
                            minval=-bound2, maxval=bound2)
    return w1, b1, w2, b2


if __name__ == "__main__":
    input_size = 32
    hidden_size = 128   # fixed by the PyTorch module
    output_size = 16
    batch = 8

    key = jax.random.PRNGKey(0)
    kx, kp = jax.random.split(key)
    x = jax.random.normal(kx, (batch, input_size), jnp.float32)
    w1, b1, w2, b2 = init_params(kp, input_size, hidden_size, output_size)

    # One-time param prep (bf16 weights), hoisted out of the jitted forward.
    w1c, b1c, w2c, b2c = prepare_params(w1, b1, w2, b2)

    fwd = jax.jit(mlp_forward)
    out = fwd(x, w1c, b1c, w2c, b2c)
    jax.block_until_ready(out)
    assert out.shape == (batch, output_size)
    assert out.dtype == jnp.float32

    # Reference 1: mirror of the bf16-MXU compute path (tight tolerance).
    xb, w1b, w2b = (t.astype(jnp.bfloat16) for t in (x, w1, w2))
    h_ref = jnp.maximum(
        jnp.dot(xb, w1b, preferred_element_type=jnp.float32) + b1, 0.0)
    ref_bf16 = jnp.dot(h_ref.astype(jnp.bfloat16), w2b,
                       preferred_element_type=jnp.float32) + b2
    assert jnp.allclose(out, ref_bf16, atol=1e-3, rtol=1e-3)

    # Reference 2: pure f32 PyTorch-equivalent forward (loose; bf16 MXU inputs).
    # TODO(synk): if strict f32 parity with nn.Linear is required, pass f32
    # weights (skip prepare_params) — the kernel then computes entirely in f32.
    ref_f32 = jnp.maximum(x @ w1 + b1, 0.0) @ w2 + b2
    assert jnp.allclose(out, ref_f32, atol=5e-2, rtol=5e-2)

    print("KERNEL_OK")
</pallas_src>

<mosaic_0001>
module attributes {stable_mosaic.version = 11 : i64} {
  func.func @mlp_kernel(%arg0: i32, %arg1: memref<8x32xf32, #tpu.memory_space<vmem>>, %arg2: memref<32x128xbf16, #tpu.memory_space<vmem>>, %arg3: memref<1x128xf32, #tpu.memory_space<vmem>>, %arg4: memref<128x16xbf16, #tpu.memory_space<vmem>>, %arg5: memref<1x16xf32, #tpu.memory_space<vmem>>, %arg6: memref<8x16xf32, #tpu.memory_space<vmem>>) attributes {dimension_semantics = [#tpu.dimension_semantics<parallel>], iteration_bounds = array<i64: 1>, scalar_prefetch = 0 : i64, scratch_operands = 0 : i64, tpu.core_type = #tpu.core_type<tc>, window_params = [{transform_indices = @transform_0, window_bounds = array<i64: 8, 32>}, {pipeline_mode = #tpu.pipeline_mode<synchronous>, transform_indices = @transform_1, window_bounds = array<i64: 32, 128>}, {pipeline_mode = #tpu.pipeline_mode<synchronous>, transform_indices = @transform_2, window_bounds = array<i64: 1, 128>}, {pipeline_mode = #tpu.pipeline_mode<synchronous>, transform_indices = @transform_3, window_bounds = array<i64: 128, 16>}, {pipeline_mode = #tpu.pipeline_mode<synchronous>, transform_indices = @transform_4, window_bounds = array<i64: 1, 16>}, {transform_indices = @transform_5, window_bounds = array<i64: 8, 16>}]} {
    %c0 = arith.constant 0 : index
    %c0_0 = arith.constant 0 : index
    %0 = vector.load %arg1[%c0, %c0_0] : memref<8x32xf32, #tpu.memory_space<vmem>>, vector<8x32xf32>
    %1 = arith.truncf %0 : vector<8x32xf32> to vector<8x32xbf16>
    %c0_1 = arith.constant 0 : index
    %c0_2 = arith.constant 0 : index
    %2 = vector.load %arg2[%c0_1, %c0_2] : memref<32x128xbf16, #tpu.memory_space<vmem>>, vector<32x128xbf16>
    %cst = arith.constant dense<0.000000e+00> : vector<8x128xf32>
    %3 = tpu.matmul %1, %2, %cst {dimension_numbers = #tpu.dot_dimension_numbers<[1], [0], [0], [1], [0, 0, 1, 1], [], []>} : vector<8x32xbf16>, vector<32x128xbf16>, vector<8x128xf32> -> vector<8x128xf32>
    %c0_3 = arith.constant 0 : index
    %c0_4 = arith.constant 0 : index
    %4 = vector.load %arg3[%c0_3, %c0_4] : memref<1x128xf32, #tpu.memory_space<vmem>>, vector<1x128xf32>
    %5 = vector.broadcast %4 : vector<1x128xf32> to vector<8x128xf32>
    %6 = arith.addf %3, %5 : vector<8x128xf32>
    %cst_5 = arith.constant 0.000000e+00 : f32
    %7 = vector.broadcast %cst_5 : f32 to vector<8x128xf32>
    %8 = arith.maximumf %6, %7 : vector<8x128xf32>
    %9 = arith.truncf %8 : vector<8x128xf32> to vector<8x128xbf16>
    %c0_6 = arith.constant 0 : index
    %c0_7 = arith.constant 0 : index
    %10 = vector.load %arg4[%c0_6, %c0_7] : memref<128x16xbf16, #tpu.memory_space<vmem>>, vector<128x16xbf16>
    %cst_8 = arith.constant dense<0.000000e+00> : vector<8x16xf32>
    %11 = tpu.matmul %9, %10, %cst_8 {dimension_numbers = #tpu.dot_dimension_numbers<[1], [0], [0], [1], [0, 0, 1, 1], [], []>} : vector<8x128xbf16>, vector<128x16xbf16>, vector<8x16xf32> -> vector<8x16xf32>
    %c0_9 = arith.constant 0 : index
    %c0_10 = arith.constant 0 : index
    %12 = vector.load %arg5[%c0_9, %c0_10] : memref<1x16xf32, #tpu.memory_space<vmem>>, vector<1x16xf32>
    %13 = vector.broadcast %12 : vector<1x16xf32> to vector<8x16xf32>
    %14 = arith.addf %11, %13 : vector<8x16xf32>
    %c0_11 = arith.constant 0 : index
    %c0_12 = arith.constant 0 : index
    %15 = vector.load %arg6[%c0_11, %c0_12] : memref<8x16xf32, #tpu.memory_space<vmem>>, vector<8x16xf32>
    tpu.vector_store %arg6[%c0_11, %c0_12], %14 {strides = array<i32>} : memref<8x16xf32, #tpu.memory_space<vmem>>, vector<8x16xf32>,
    return
  }
  func.func @transform_0(%arg0: i32) -> (i32, i32) {
    %c0_i32 = arith.constant 0 : i32
    %c0_i32_0 = arith.constant 0 : i32
    return %arg0, %c0_i32 : i32, i32
  }
  func.func @transform_1(%arg0: i32) -> (i32, i32) {
    %c0_i32 = arith.constant 0 : i32
    %c0_i32_0 = arith.constant 0 : i32
    %c0_i32_1 = arith.constant 0 : i32
    return %c0_i32, %c0_i32_0 : i32, i32
  }
  func.func @transform_2(%arg0: i32) -> (i32, i32) {
    %c0_i32 = arith.constant 0 : i32
    %c0_i32_0 = arith.constant 0 : i32
    %c0_i32_1 = arith.constant 0 : i32
    return %c0_i32, %c0_i32_0 : i32, i32
  }
  func.func @transform_3(%arg0: i32) -> (i32, i32) {
    %c0_i32 = arith.constant 0 : i32
    %c0_i32_0 = arith.constant 0 : i32
    %c0_i32_1 = arith.constant 0 : i32
    return %c0_i32, %c0_i32_0 : i32, i32
  }
  func.func @transform_4(%arg0: i32) -> (i32, i32) {
    %c0_i32 = arith.constant 0 : i32
    %c0_i32_0 = arith.constant 0 : i32
    %c0_i32_1 = arith.constant 0 : i32
    return %c0_i32, %c0_i32_0 : i32, i32
  }
  func.func @transform_5(%arg0: i32) -> (i32, i32) {
    %c0_i32 = arith.constant 0 : i32
    %c0_i32_0 = arith.constant 0 : i32
    return %arg0, %c0_i32 : i32, i32
  }
}

</mosaic_0001>

<llo_original>
// kernel: mlp_forward.1
$region0: #{mlp_forward.1}
  #allocation0 [shape = 'u32[]', space=smem, size = 0x4, offset = 0x4, fixed_abs, tag = 'smem constant byte address 0x4 - core index']
  #allocation1 [shape = 'u32[72,128]{1,0:T(1,128)}', space=vmem, size = 0x9000, scoped, tag = 'internal scratch']
  %s0 = inlined_call_operand.vmem [shape: f32[8,32], index: 0, kind: input, shape index: {}]
  %s1 = inlined_call_operand.vmem [shape: bf16[32,128], index: 1, kind: input, shape index: {}]
  %s2 = inlined_call_operand.vmem [shape: f32[1,128], index: 2, kind: input, shape index: {}]
  %s3 = inlined_call_operand.vmem [shape: bf16[128,16], index: 3, kind: input, shape index: {}]
  %s4 = inlined_call_operand.vmem [shape: f32[1,16], index: 4, kind: input, shape index: {}]
  %s5 = inlined_call_operand.hbm [shape: f32[8,16], index: 5, kind: output, shape index: {}]
  %s6 = sld [smem:[#allocation0]]
  $region30: #{mlp_forward.1} parent=0
    _
  %s8 = ssub.s32 1, %s6
  %s9 = scalar_select 0, %s8, %s6
  $region1: #{mlp_forward.1} parent=0
    #allocation2 [shape = 'u8[4096]{0}', space=vmem, size = 0x1000, scoped, tag = 'output window, operand 0, single buffered']
    #allocation3 [shape = 's32[1]{0}', space=sflag, size = 0x4, scoped, tag = 'scoped memory for mlp_forward.1']
    %10 = vsyncpa [#allocation3], 0
    // Predicated region
    $region2: #{mlp_forward.1} parent=1 // pred_check
      _
    $region3: #{mlp_forward.1} parent=1 // pred_check_branch
      %12 = sbr.rel (0) target = $region5
    $region4: #{mlp_forward.1} parent=1 // pred_region
      _
    $region5: #{mlp_forward.1} parent=1 // pred_fallthru
      _
    // Predicated region
    $region6: #{mlp_forward.1} parent=1 // pred_check
      _
    $region7: #{mlp_forward.1} parent=1 // pred_check_branch
      %14 = sbr.rel (0) target = $region9
    $region8: #{mlp_forward.1} parent=1 // pred_region
      _
    $region9: #{mlp_forward.1} parent=1 // pred_fallthru
      _
    // Predicated region
    $region10: #{mlp_forward.1} parent=1 // pred_check
      _
    $region11: #{mlp_forward.1} parent=1 // pred_check_branch
      %16 = sbr.rel (0) target = $region13
    $region12: #{mlp_forward.1} parent=1 // pred_region
      _
    $region13: #{mlp_forward.1} parent=1 // pred_fallthru
      _
    // Predicated region
    $region14: #{mlp_forward.1} parent=1 // pred_check
      _
    $region15: #{mlp_forward.1} parent=1 // pred_check_branch
      %18 = sbr.rel (0) target = $region17
    $region16: #{mlp_forward.1} parent=1 // pred_region
      _
    $region17: #{mlp_forward.1} parent=1 // pred_fallthru
      _
    // Predicated region
    $region18: #{mlp_forward.1} parent=1 // pred_check
      _
    $region19: #{mlp_forward.1} parent=1 // pred_check_branch
      %20 = sbr.rel (0) target = $region21
    $region20: #{mlp_forward.1} parent=1 // pred_region
      _
    $region21: #{mlp_forward.1} parent=1 // pred_fallthru
      _
    %v22 = vld [vmem:[%s0] sm:$0xff]
    %v23 = vpack.c.bf16 %v22, %v22
    %v24 = vld [vmem:[%s1] sm:$0xf]
    %v25 = vld [vmem:[%s1 + $0x4] sm:$0xf]
    %v26 = vld [vmem:[%s1 + $0x8] sm:$0xf]
    %v27 = vld [vmem:[%s1 + $0xc] sm:$0xf]
    %v28 = vld [vmem:[%s2] sm:$0x1]
    %v30 = vperm.slane %v28, 0
    %v36 = vunpack.c.l.b16 %v24
    %v37 = vunpack.c.l.b16 %v25
    %v38 = vunpack.c.l.b16 %v26
    %v39 = vunpack.c.l.b16 %v27
    %v40 = vpack.c.b16 %v37, %v36
    %v41 = vpack.c.b16 %v39, %v38
    %vm44 = vcmask 261120
    %v46 = vsel %vm44, %v23, 0
    %48 = vmatpush.bf16.msra.mxu0 0
    %49 = vmatpush.bf16.msra.mxu0 0
    %50 = vmatpush.bf16.msra.mxu0 0
    %51 = vmatpush.bf16.msra.mxu0 0
    %52 = vmatpush.bf16.msra.mxu0 0
    %53 = vmatpush.bf16.msra.mxu0 0
    %54 = vmatpush.bf16.msra.mxu0 %v41
    %55 = vmatpush.bf16.msra.mxu0 %v40
    %56 = vmatmul.bf16.gmra.mxu0 %v46
    %v57 = vpop.f32.mrf.mxu0
    %v58 = vadd.f32 %v30, %v57
    %v59 = vpop.f32.mrf.mxu0
    %60 = vdwg.mxu0
    %v61 = vmax.f32 %v58, 0.0
    %v62 = vpack.c.bf16 %v61, %v61
    %v63 = vld [vmem:[%s3] sm:$0xf]
    %v64 = vld [vmem:[%s3 + $0x4] sm:$0xf]
    %v65 = vld [vmem:[%s3 + $0x8] sm:$0xf]
    %v66 = vld [vmem:[%s3 + $0xc] sm:$0xf]
    %v67 = vld [vmem:[%s3 + $0x10] sm:$0xf]
    %v68 = vld [vmem:[%s3 + $0x14] sm:$0xf]
    %v69 = vld [vmem:[%s3 + $0x18] sm:$0xf]
    %v70 = vld [vmem:[%s3 + $0x1c] sm:$0xf]
    %v71 = vld [vmem:[%s3 + $0x20] sm:$0xf]
    %v72 = vld [vmem:[%s3 + $0x24] sm:$0xf]
    %v73 = vld [vmem:[%s3 + $0x28] sm:$0xf]
    %v74 = vld [vmem:[%s3 + $0x2c] sm:$0xf]
    %v75 = vld [vmem:[%s3 + $0x30] sm:$0xf]
    %v76 = vld [vmem:[%s3 + $0x34] sm:$0xf]
    %v77 = vld [vmem:[%s3 + $0x38] sm:$0xf]
    %v78 = vld [vmem:[%s3 + $0x3c] sm:$0xf]
    %v79 = vld [vmem:[%s4] sm:$0x1]
    %v81 = vperm.slane %v79, 0
    %v99 = vunpack.c.l.b16 %v63
    %v100 = vunpack.c.l.b16 %v64
    %v101 = vunpack.c.l.b16 %v65
    %v102 = vunpack.c.l.b16 %v66
    %v103 = vunpack.c.l.b16 %v67
    %v104 = vunpack.c.l.b16 %v68
    %v105 = vunpack.c.l.b16 %v69
    %v106 = vunpack.c.l.b16 %v70
    %v107 = vunpack.c.l.b16 %v71
    %v108 = vunpack.c.l.b16 %v72
    %v109 = vunpack.c.l.b16 %v73
    %v110 = vunpack.c.l.b16 %v74
    %v111 = vunpack.c.l.b16 %v75
    %v112 = vunpack.c.l.b16 %v76
    %v113 = vunpack.c.l.b16 %v77
    %v114 = vunpack.c.l.b16 %v78
    %v115 = vpack.c.b16 %v100, %v99
    %v116 = vpack.c.b16 %v102, %v101
    %v117 = vpack.c.b16 %v104, %v103
    %v118 = vpack.c.b16 %v106, %v105
    %v119 = vpack.c.b16 %v108, %v107
    %v120 = vpack.c.b16 %v110, %v109
    %v121 = vpack.c.b16 %v112, %v111
    %v122 = vpack.c.b16 %v114, %v113
    %131 = vmatpush.bf16.msra.mxu0 %v122
    %132 = vmatpush.bf16.msra.mxu0 %v121
    %133 = vmatpush.bf16.msra.mxu0 %v120
    %134 = vmatpush.bf16.msra.mxu0 %v119
    %135 = vmatpush.bf16.msra.mxu0 %v118
    %136 = vmatpush.bf16.msra.mxu0 %v117
    %137 = vmatpush.bf16.msra.mxu0 %v116
    %138 = vmatpush.bf16.msra.mxu0 %v115
    %139 = vmatmul.bf16.gmra.mxu0 %v62
    %v140 = vpop.f32.mrf.mxu0
    %v141 = vadd.f32 %v81, %v140
    %v142 = vpop.f32.mrf.mxu0
    %143 = vdwg.mxu0
    %vm144 = vcmask 130048
    %145 = vst.msk [vmem:[#allocation2] sm:$0xff] %vm144, %v141
    // Predicated region
    $region22: #{mlp_forward.1} parent=1 // pred_check
      _
    $region23: #{mlp_forward.1} parent=1 // pred_check_branch
      %147 = sbr.rel (0) target = $region25
    $region24: #{mlp_forward.1} parent=1 // pred_region
      %149 = vsyncadd [#allocation3], 0
      %s151 = sshll.u32 [#allocation2], 4
      %s152 = int_to_ptr.vmem [resolvable:$true] %s151
      %s153 = sshll.u32 %s5, 4
      %s154 = int_to_ptr.hbm [resolvable:$true] %s153
      %156 = dma.vmem_to_hbm [thread:$0]  %s152, 128, %s154, [#allocation3]
    $region25: #{mlp_forward.1} parent=1 // pred_fallthru
      _
    // Predicated region
    $region26: #{mlp_forward.1} parent=1 // pred_check
      _
    $region27: #{mlp_forward.1} parent=1 // pred_check_branch
      %158 = sbr.rel (0) target = $region29
    $region28: #{mlp_forward.1} parent=1 // pred_region
      %160 = dma.done [#allocation3], 128
    $region29: #{mlp_forward.1} parent=1 // pred_fallthru
      _
    %161 = vsyncpa [#allocation3], 1

</llo_original>
